<compile_context>
chip_gen: v6e
topology: v6e:2x2x1
jax: 0.10.0
libtpu: 0.0.40
codegen_flags: <defaults>
</compile_context>

<pallas_src>
import jax
import jax.numpy as jnp
from jax.experimental import pallas as pl
from jax.experimental.pallas import tpu as pltpu


def _round_up(x, m):
    return ((x + m - 1) // m) * m


def svd_linear_kernel(x_ref, vs_ref, ut_ref, b_ref, o_ref):
    # x_ref : (tb, out_h_p)   bf16   input row tile (zero-padded features)
    # vs_ref: (out_h_p, r_p)  bf16   V * diag(S), zero-padded, constant block (resident)
    # ut_ref: (r_p, ti)       bf16   U^T tile along in_h
    # b_ref : (1, ti)         f32    bias tile
    # o_ref : (tb, ti)        f32    output tile
    t = jnp.dot(x_ref[...], vs_ref[...],
                preferred_element_type=jnp.float32)          # (tb, r_p) f32 MXU acc
    t = t.astype(jnp.bfloat16)                               # bf16 operand for 2nd matmul
    y = jnp.dot(t, ut_ref[...],
                preferred_element_type=jnp.float32)          # (tb, ti) f32 MXU acc
    o_ref[...] = (y + b_ref[...]).astype(o_ref.dtype)        # lane-dense unmasked store


def svd_linear_forward(x, U, S, V, bias=None, *, tile_rows=256, tile_in=512):
    """x: (..., out_h) -> (..., in_h), computing ((x @ (V*S)) @ U.T) + bias."""
    orig_shape = x.shape
    out_h = orig_shape[-1]
    in_h, r = U.shape
    assert V.shape == (out_h, r)
    x2d = x.reshape(-1, out_h)
    N = x2d.shape[0]

    # ---- one-time parameter transforms (setup glue, not per-step kernel work) ----
    Vs = (V * S[None, :]).astype(jnp.bfloat16)           # (out_h, r)  fold diag(S)
    Ut = U.T.astype(jnp.bfloat16)                        # (r, in_h)   pre-transposed
    b = jnp.zeros((in_h,), jnp.float32) if bias is None else bias.astype(jnp.float32)

    # ---- lane-dense padding (zeros are exact: padded rows/cols contribute nothing) ----
    out_h_p = _round_up(out_h, 128)
    r_p = _round_up(r, 128)
    in_h_p = _round_up(in_h, 128)

    # Row tile: multiple of 8 sublanes, capped at tile_rows (default 256).
    tb = _round_up(min(tile_rows, _round_up(N, 8)), 8)
    N_p = _round_up(N, tb)

    # Output-feature tile: multiple of 128, capped at tile_in.
    ti = _round_up(min(tile_in, in_h_p), 128)
    in_h_p = _round_up(in_h_p, ti)

    x_p = jnp.zeros((N_p, out_h_p), jnp.bfloat16).at[:N, :out_h].set(x2d.astype(jnp.bfloat16))
    Vs_p = jnp.zeros((out_h_p, r_p), jnp.bfloat16).at[:out_h, :r].set(Vs)
    Ut_p = jnp.zeros((r_p, in_h_p), jnp.bfloat16).at[:r, :in_h].set(Ut)
    b_p = jnp.zeros((1, in_h_p), jnp.float32).at[0, :in_h].set(b)

    grid = (N_p // tb, in_h_p // ti)

    # VMEM budget: double-buffered x / U^T / bias / out tiles + (conservatively
    # double-buffered) resident V*S block, with 2x headroom, clamped to [32, 96] MiB.
    vmem_bytes = (2 * tb * out_h_p * 2        # x tiles (bf16)
                  + 2 * out_h_p * r_p * 2     # V*S (bf16, constant block index)
                  + 2 * r_p * ti * 2          # U^T tiles (bf16)
                  + 2 * ti * 4                # bias tiles (f32)
                  + 2 * tb * ti * 4)          # out tiles (f32)
    vmem_limit = int(min(96 * 1024 * 1024, max(32 * 1024 * 1024, 2 * vmem_bytes)))

    y_p = pl.pallas_call(
        svd_linear_kernel,
        out_shape=jax.ShapeDtypeStruct((N_p, in_h_p), jnp.float32),
        grid_spec=pltpu.PrefetchScalarGridSpec(
            num_scalar_prefetch=0,
            grid=grid,
            in_specs=[
                pl.BlockSpec((tb, out_h_p), lambda i, j: (i, 0)),    # x row tile
                pl.BlockSpec((out_h_p, r_p), lambda i, j: (0, 0)),   # V*S (resident)
                pl.BlockSpec((r_p, ti), lambda i, j: (0, j)),        # U^T feature tile
                pl.BlockSpec((1, ti), lambda i, j: (0, j)),          # bias feature tile
            ],
            out_specs=pl.BlockSpec((tb, ti), lambda i, j: (i, j)),
        ),
        compiler_params=pltpu.CompilerParams(
            dimension_semantics=("parallel", "parallel"),
            vmem_limit_bytes=vmem_limit,
        ),
    )(x_p, Vs_p, Ut_p, b_p)

    y = y_p[:N, :in_h].astype(x.dtype)
    return y.reshape(*orig_shape[:-1], in_h)


if __name__ == "__main__":
    key = jax.random.PRNGKey(0)
    k_w, k_x, k_b = jax.random.split(key, 3)

    # Module construction shapes (synthetic, deterministic).
    in_hidden = 32     # weight.shape[0]
    out_hidden = 48    # weight.shape[1]
    batch, seq = 2, 8

    # Deterministic "original" weight; SVD done in plain JAX (parameter-setup glue,
    # mirrors SVDLinearModule.reset_parameters with topk=None -> full rank).
    weight = jax.random.normal(k_w, (in_hidden, out_hidden), dtype=jnp.float32)
    u, s, vh = jnp.linalg.svd(weight, full_matrices=False)   # u:(in,r) s:(r,) vh:(r,out)
    U = u                      # (in_hidden, rank)
    S = s                      # (rank,)
    V = vh.T                   # (out_hidden, rank)  == module's self.weight
    bias = jax.random.normal(k_b, (in_hidden,), dtype=jnp.float32)

    # Input: last dim equals out_hidden (in_features of W_eff for F.linear).
    x = jax.random.normal(k_x, (batch, seq, out_hidden), dtype=jnp.float32)

    y = svd_linear_forward(x, U, S, V, bias)
    jax.block_until_ready(y)

    # Reference check (plain JAX, f32). bf16 matmul operands with f32 accumulation
    # => check relative Frobenius error rather than tight elementwise allclose.
    w_eff = U @ jnp.diag(S) @ V.T                    # (in_hidden, out_hidden)
    y_ref = x @ w_eff.T + bias
    rel_err = jnp.linalg.norm(y - y_ref) / jnp.linalg.norm(y_ref)
    assert y.shape == (batch, seq, in_hidden)
    assert float(rel_err) < 2e-2, f"mismatch vs reference (rel_err={float(rel_err)})"

    print("KERNEL_OK")
</pallas_src>

<mosaic_0001>
module attributes {stable_mosaic.version = 11 : i64} {
  func.func @svd_linear_kernel(%arg0: i32, %arg1: i32, %arg2: memref<16x128xbf16, #tpu.memory_space<vmem>>, %arg3: memref<128x128xbf16, #tpu.memory_space<vmem>>, %arg4: memref<128x128xbf16, #tpu.memory_space<vmem>>, %arg5: memref<1x128xf32, #tpu.memory_space<vmem>>, %arg6: memref<16x128xf32, #tpu.memory_space<vmem>>) attributes {dimension_semantics = [#tpu.dimension_semantics<parallel>, #tpu.dimension_semantics<parallel>], iteration_bounds = array<i64: 1, 1>, scalar_prefetch = 0 : i64, scratch_operands = 0 : i64, tpu.core_type = #tpu.core_type<tc>, window_params = [{transform_indices = @transform_0, window_bounds = array<i64: 16, 128>}, {pipeline_mode = #tpu.pipeline_mode<synchronous>, transform_indices = @transform_1, window_bounds = array<i64: 128, 128>}, {transform_indices = @transform_2, window_bounds = array<i64: 128, 128>}, {transform_indices = @transform_3, window_bounds = array<i64: 1, 128>}, {transform_indices = @transform_4, window_bounds = array<i64: 16, 128>}]} {
    %c0 = arith.constant 0 : index
    %c0_0 = arith.constant 0 : index
    %0 = vector.load %arg2[%c0, %c0_0] : memref<16x128xbf16, #tpu.memory_space<vmem>>, vector<16x128xbf16>
    %c0_1 = arith.constant 0 : index
    %c0_2 = arith.constant 0 : index
    %1 = vector.load %arg3[%c0_1, %c0_2] : memref<128x128xbf16, #tpu.memory_space<vmem>>, vector<128x128xbf16>
    %cst = arith.constant dense<0.000000e+00> : vector<16x128xf32>
    %2 = tpu.matmul %0, %1, %cst {dimension_numbers = #tpu.dot_dimension_numbers<[1], [0], [0], [1], [0, 0, 1, 1], [], []>} : vector<16x128xbf16>, vector<128x128xbf16>, vector<16x128xf32> -> vector<16x128xf32>
    %3 = arith.truncf %2 : vector<16x128xf32> to vector<16x128xbf16>
    %c0_3 = arith.constant 0 : index
    %c0_4 = arith.constant 0 : index
    %4 = vector.load %arg4[%c0_3, %c0_4] : memref<128x128xbf16, #tpu.memory_space<vmem>>, vector<128x128xbf16>
    %cst_5 = arith.constant dense<0.000000e+00> : vector<16x128xf32>
    %5 = tpu.matmul %3, %4, %cst_5 {dimension_numbers = #tpu.dot_dimension_numbers<[1], [0], [0], [1], [0, 0, 1, 1], [], []>} : vector<16x128xbf16>, vector<128x128xbf16>, vector<16x128xf32> -> vector<16x128xf32>
    %c0_6 = arith.constant 0 : index
    %c0_7 = arith.constant 0 : index
    %6 = vector.load %arg5[%c0_6, %c0_7] : memref<1x128xf32, #tpu.memory_space<vmem>>, vector<1x128xf32>
    %7 = vector.broadcast %6 : vector<1x128xf32> to vector<16x128xf32>
    %8 = arith.addf %5, %7 : vector<16x128xf32>
    %c0_8 = arith.constant 0 : index
    %c0_9 = arith.constant 0 : index
    %9 = vector.load %arg6[%c0_8, %c0_9] : memref<16x128xf32, #tpu.memory_space<vmem>>, vector<16x128xf32>
    tpu.vector_store %arg6[%c0_8, %c0_9], %8 {strides = array<i32>} : memref<16x128xf32, #tpu.memory_space<vmem>>, vector<16x128xf32>,
    return
  }
  func.func @transform_0(%arg0: i32, %arg1: i32) -> (i32, i32) {
    %c0_i32 = arith.constant 0 : i32
    %c0_i32_0 = arith.constant 0 : i32
    return %arg0, %c0_i32 : i32, i32
  }
  func.func @transform_1(%arg0: i32, %arg1: i32) -> (i32, i32) {
    %c0_i32 = arith.constant 0 : i32
    %c0_i32_0 = arith.constant 0 : i32
    %c0_i32_1 = arith.constant 0 : i32
    return %c0_i32, %c0_i32_0 : i32, i32
  }
  func.func @transform_2(%arg0: i32, %arg1: i32) -> (i32, i32) {
    %c0_i32 = arith.constant 0 : i32
    %c0_i32_0 = arith.constant 0 : i32
    return %c0_i32, %arg1 : i32, i32
  }
  func.func @transform_3(%arg0: i32, %arg1: i32) -> (i32, i32) {
    %c0_i32 = arith.constant 0 : i32
    %c0_i32_0 = arith.constant 0 : i32
    return %c0_i32, %arg1 : i32, i32
  }
  func.func @transform_4(%arg0: i32, %arg1: i32) -> (i32, i32) {
    %c0_i32 = arith.constant 0 : i32
    return %arg0, %arg1 : i32, i32
  }
}

</mosaic_0001>

<llo_original>
// kernel: tpu_custom_call.1
$region0: #{tpu_custom_call.1}
  #allocation0 [shape = 'u32[]', space=smem, size = 0x4, offset = 0x4, fixed_abs, tag = 'smem constant byte address 0x4 - core index']
  #allocation1 [shape = 'u32[144,128]{1,0:T(1,128)}', space=vmem, size = 0x12000, scoped, tag = 'internal scratch']
  %s0 = inlined_call_operand.hbm [shape: bf16[16,128], index: 0, kind: input, shape index: {}]
  %s1 = inlined_call_operand.hbm [shape: bf16[128,128], index: 1, kind: input, shape index: {}]
  %s2 = inlined_call_operand.hbm [shape: bf16[128,128], index: 2, kind: input, shape index: {}]
  %s3 = inlined_call_operand.vmem [shape: f32[1,128], index: 3, kind: input, shape index: {}]
  %s4 = inlined_call_operand.hbm [shape: f32[16,128], index: 4, kind: output, shape index: {}]
  %s5 = sld [smem:[#allocation0]]
  $region38: #{tpu_custom_call.1} parent=0
    _
  %s7 = ssub.s32 1, %s5
  %s8 = scalar_select 0, %s7, %s5
  $region1: #{tpu_custom_call.1} parent=0
    #allocation2 [shape = 'u8[4096]{0}', space=vmem, size = 0x1000, scoped, tag = 'input window, operand 0, single buffered']
    #allocation3 [shape = 's32[1]{0}', space=sflag, size = 0x4, scoped, tag = 'scoped memory for tpu_custom_call.1']
    #allocation4 [shape = 's32[1]{0}', space=sflag, size = 0x4, scoped, tag = 'scoped memory for tpu_custom_call.1']
    #allocation5 [shape = 'u8[32768]{0}', space=vmem, size = 0x8000, scoped, tag = 'input window, operand 1, single buffered']
    #allocation6 [shape = 's32[1]{0}', space=sflag, size = 0x4, scoped, tag = 'scoped memory for tpu_custom_call.1']
    #allocation7 [shape = 'u8[32768]{0}', space=vmem, size = 0x8000, scoped, tag = 'input window, operand 2, single buffered']
    #allocation8 [shape = 'u8[8192]{0}', space=vmem, size = 0x2000, scoped, tag = 'output window, operand 0, single buffered']
    %9 = vsyncpa [#allocation3], 0
    %10 = vsyncpa [#allocation6], 0
    %11 = vsyncpa [#allocation4], 0
    // Predicated region
    $region2: #{tpu_custom_call.1} parent=1 // pred_check
      _
    $region3: #{tpu_custom_call.1} parent=1 // pred_check_branch
      %13 = sbr.rel (0) target = $region5
    $region4: #{tpu_custom_call.1} parent=1 // pred_region
      %s15 = ssub.s32 128, 128
      %16 = vsyncadd [#allocation3], %s15
      %s17 = sshll.u32 [#allocation2], 4
      %s18 = int_to_ptr.vmem [resolvable:$true] %s17
      %23 = dma.hbm_to_vmem [thread:$0]  %s0, 128, %s18, [#allocation3], 64, 64, 4
    $region5: #{tpu_custom_call.1} parent=1 // pred_fallthru
      _
    // Predicated region
    $region6: #{tpu_custom_call.1} parent=1 // pred_check
      _
    $region7: #{tpu_custom_call.1} parent=1 // pred_check_branch
      %25 = sbr.rel (0) target = $region9
    $region8: #{tpu_custom_call.1} parent=1 // pred_region
      %s27 = ssub.s32 1024, 1024
      %28 = vsyncadd [#allocation6], %s27
      %s29 = sshll.u32 [#allocation5], 4
      %s30 = int_to_ptr.vmem [resolvable:$true] %s29
      %35 = dma.hbm_to_vmem [thread:$0]  %s1, 1024, %s30, [#allocation6], 64, 64, 4
    $region9: #{tpu_custom_call.1} parent=1 // pred_fallthru
      _
    // Predicated region
    $region10: #{tpu_custom_call.1} parent=1 // pred_check
      _
    $region11: #{tpu_custom_call.1} parent=1 // pred_check_branch
      %37 = sbr.rel (0) target = $region13
    $region12: #{tpu_custom_call.1} parent=1 // pred_region
      %s39 = ssub.s32 1024, 1024
      %40 = vsyncadd [#allocation6], %s39
      %s41 = sshll.u32 [#allocation7], 4
      %s42 = int_to_ptr.vmem [resolvable:$true] %s41
      %47 = dma.hbm_to_vmem [thread:$0]  %s2, 1024, %s42, [#allocation6], 64, 64, 4
    $region13: #{tpu_custom_call.1} parent=1 // pred_fallthru
      _
    // Predicated region
    $region14: #{tpu_custom_call.1} parent=1 // pred_check
      _
    $region15: #{tpu_custom_call.1} parent=1 // pred_check_branch
      %49 = sbr.rel (0) target = $region17
    $region16: #{tpu_custom_call.1} parent=1 // pred_region
      _
    $region17: #{tpu_custom_call.1} parent=1 // pred_fallthru
      _
    // Predicated region
    $region18: #{tpu_custom_call.1} parent=1 // pred_check
      _
    $region19: #{tpu_custom_call.1} parent=1 // pred_check_branch
      %51 = sbr.rel (0) target = $region21
    $region20: #{tpu_custom_call.1} parent=1 // pred_region
      %52 = dma.done [#allocation3], 128
    $region21: #{tpu_custom_call.1} parent=1 // pred_fallthru
      _
    // Predicated region
    $region22: #{tpu_custom_call.1} parent=1 // pred_check
      _
    $region23: #{tpu_custom_call.1} parent=1 // pred_check_branch
      %54 = sbr.rel (0) target = $region25
    $region24: #{tpu_custom_call.1} parent=1 // pred_region
      %55 = dma.done [#allocation6], 1024
    $region25: #{tpu_custom_call.1} parent=1 // pred_fallthru
      _
    // Predicated region
    $region26: #{tpu_custom_call.1} parent=1 // pred_check
      _
    $region27: #{tpu_custom_call.1} parent=1 // pred_check_branch
      %57 = sbr.rel (0) target = $region29
    $region28: #{tpu_custom_call.1} parent=1 // pred_region
      %58 = dma.done [#allocation6], 1024
    $region29: #{tpu_custom_call.1} parent=1 // pred_fallthru
      _
    %v60 = vld [vmem:[#allocation2] sm:$0xf]
    %v61 = vld [vmem:[#allocation2 + $0x4] sm:$0xf]
    %v62 = vld [vmem:[#allocation5] sm:$0xf]
    %v63 = vld [vmem:[#allocation5 + $0x4] sm:$0xf]
    %v64 = vld [vmem:[#allocation5 + $0x8] sm:$0xf]
    %v65 = vld [vmem:[#allocation5 + $0xc] sm:$0xf]
    %v66 = vld [vmem:[#allocation5 + $0x10] sm:$0xf]
    %v67 = vld [vmem:[#allocation5 + $0x14] sm:$0xf]
    %v68 = vld [vmem:[#allocation5 + $0x18] sm:$0xf]
    %v69 = vld [vmem:[#allocation5 + $0x1c] sm:$0xf]
    %v70 = vld [vmem:[#allocation5 + $0x20] sm:$0xf]
    %v71 = vld [vmem:[#allocation5 + $0x24] sm:$0xf]
    %v72 = vld [vmem:[#allocation5 + $0x28] sm:$0xf]
    %v73 = vld [vmem:[#allocation5 + $0x2c] sm:$0xf]
    %v74 = vld [vmem:[#allocation5 + $0x30] sm:$0xf]
    %v75 = vld [vmem:[#allocation5 + $0x34] sm:$0xf]
    %v76 = vld [vmem:[#allocation5 + $0x38] sm:$0xf]
    %v77 = vld [vmem:[#allocation5 + $0x3c] sm:$0xf]
    %v80 = vunpack.c.l.b16 %v60
    %v81 = vunpack.c.l.b16 %v61
    %v82 = vpack.c.b16 %v81, %v80
    %v100 = vunpack.c.l.b16 %v62
    %v101 = vunpack.c.l.b16 %v63
    %v102 = vunpack.c.l.b16 %v64
    %v103 = vunpack.c.l.b16 %v65
    %v104 = vunpack.c.l.b16 %v66
    %v105 = vunpack.c.l.b16 %v67
    %v106 = vunpack.c.l.b16 %v68
    %v107 = vunpack.c.l.b16 %v69
    %v108 = vunpack.c.l.b16 %v70
    %v109 = vunpack.c.l.b16 %v71
    %v110 = vunpack.c.l.b16 %v72
    %v111 = vunpack.c.l.b16 %v73
    %v112 = vunpack.c.l.b16 %v74
    %v113 = vunpack.c.l.b16 %v75
    %v114 = vunpack.c.l.b16 %v76
    %v115 = vunpack.c.l.b16 %v77
    %v116 = vpack.c.b16 %v101, %v100
    %v117 = vpack.c.b16 %v103, %v102
    %v118 = vpack.c.b16 %v105, %v104
    %v119 = vpack.c.b16 %v107, %v106
    %v120 = vpack.c.b16 %v109, %v108
    %v121 = vpack.c.b16 %v111, %v110
    %v122 = vpack.c.b16 %v113, %v112
    %v123 = vpack.c.b16 %v115, %v114
    %132 = vmatprep.subr.bf16.mxu0 0
    %133 = vmatpush1.bf16.msra.mxu0 %v123
    %134 = vmatprep.subr.bf16.mxu0 0
    %135 = vmatpush1.bf16.msra.mxu0 %v122
    %136 = vmatprep.subr.bf16.mxu0 0
    %137 = vmatpush1.bf16.msra.mxu0 %v121
    %138 = vmatprep.subr.bf16.mxu0 0
    %139 = vmatpush1.bf16.msra.mxu0 %v120
    %140 = vmatprep.subr.bf16.mxu0 0
    %141 = vmatpush1.bf16.msra.mxu0 %v119
    %142 = vmatprep.subr.bf16.mxu0 0
    %143 = vmatpush1.bf16.msra.mxu0 %v118
    %144 = vmatprep.subr.bf16.mxu0 0
    %145 = vmatpush1.bf16.msra.mxu0 %v117
    %146 = vmatprep.subr.bf16.mxu0 0
    %147 = vmatpush1.bf16.msra.mxu0 %v116
    %148 = vmatprep.subr.bf16.mxu0 0
    %149 = vmatpush2.bf16.msra.mxu0 0
    %150 = vmatprep.subr.bf16.mxu0 0
    %151 = vmatpush2.bf16.msra.mxu0 0
    %152 = vmatprep.subr.bf16.mxu0 0
    %153 = vmatpush2.bf16.msra.mxu0 0
    %154 = vmatprep.subr.bf16.mxu0 0
    %155 = vmatpush2.bf16.msra.mxu0 0
    %156 = vmatprep.subr.bf16.mxu0 0
    %157 = vmatpush2.bf16.msra.mxu0 0
    %158 = vmatprep.subr.bf16.mxu0 0
    %159 = vmatpush2.bf16.msra.mxu0 0
    %160 = vmatprep.subr.bf16.mxu0 0
    %161 = vmatpush2.bf16.msra.mxu0 0
    %162 = vmatprep.subr.bf16.mxu0 0
    %163 = vmatpush2.bf16.msra.mxu0 0
    %164 = vmatprep.mubr.bf16.mxu0 0
    %165 = vmatmul.mubr.bf16.gmra.mxu0 %v82
    %v166 = vpop.f32.mrf.mxu0
    %v167 = vadd.f32 0.0, %v166
    %v168 = vpop.f32.mrf.mxu0
    %v169 = vpop.f32.mrf.mxu0
    %v170 = vadd.f32 0.0, %v169
    %v171 = vpop.f32.mrf.mxu0
    %172 = vdwg.mxu0
    %v173 = vpack.c.bf16 %v170, %v167
    %v174 = vld [vmem:[#allocation7] sm:$0xf]
    %v175 = vld [vmem:[#allocation7 + $0x4] sm:$0xf]
    %v176 = vld [vmem:[#allocation7 + $0x8] sm:$0xf]
    %v177 = vld [vmem:[#allocation7 + $0xc] sm:$0xf]
    %v178 = vld [vmem:[#allocation7 + $0x10] sm:$0xf]
    %v179 = vld [vmem:[#allocation7 + $0x14] sm:$0xf]
    %v180 = vld [vmem:[#allocation7 + $0x18] sm:$0xf]
    %v181 = vld [vmem:[#allocation7 + $0x1c] sm:$0xf]
    %v182 = vld [vmem:[#allocation7 + $0x20] sm:$0xf]
    %v183 = vld [vmem:[#allocation7 + $0x24] sm:$0xf]
    %v184 = vld [vmem:[#allocation7 + $0x28] sm:$0xf]
    %v185 = vld [vmem:[#allocation7 + $0x2c] sm:$0xf]
    %v186 = vld [vmem:[#allocation7 + $0x30] sm:$0xf]
    %v187 = vld [vmem:[#allocation7 + $0x34] sm:$0xf]
    %v188 = vld [vmem:[#allocation7 + $0x38] sm:$0xf]
    %v189 = vld [vmem:[#allocation7 + $0x3c] sm:$0xf]
    %v190 = vld [vmem:[%s3] sm:$0x1]
    %v192 = vlaneseq
    %v193 = vshrl.u32 %v192, 7
    %v194 = vsub.s32 0, %v193
    %v195 = vrot.slane %v190, %v194
    %v213 = vunpack.c.l.b16 %v174
    %v214 = vunpack.c.l.b16 %v175
    %v215 = vunpack.c.l.b16 %v176
    %v216 = vunpack.c.l.b16 %v177
    %v217 = vunpack.c.l.b16 %v178
    %v218 = vunpack.c.l.b16 %v179
    %v219 = vunpack.c.l.b16 %v180
    %v220 = vunpack.c.l.b16 %v181
    %v221 = vunpack.c.l.b16 %v182
    %v222 = vunpack.c.l.b16 %v183
    %v223 = vunpack.c.l.b16 %v184
    %v224 = vunpack.c.l.b16 %v185
    %v225 = vunpack.c.l.b16 %v186
    %v226 = vunpack.c.l.b16 %v187
    %v227 = vunpack.c.l.b16 %v188
    %v228 = vunpack.c.l.b16 %v189
    %v229 = vpack.c.b16 %v214, %v213
    %v230 = vpack.c.b16 %v216, %v215
    %v231 = vpack.c.b16 %v218, %v217
    %v232 = vpack.c.b16 %v220, %v219
    %v233 = vpack.c.b16 %v222, %v221
    %v234 = vpack.c.b16 %v224, %v223
    %v235 = vpack.c.b16 %v226, %v225
    %v236 = vpack.c.b16 %v228, %v227
    %245 = vmatprep.subr.bf16.mxu0 0
    %246 = vmatpush1.bf16.msra.mxu0 %v236
    %247 = vmatprep.subr.bf16.mxu0 0
    %248 = vmatpush1.bf16.msra.mxu0 %v235
    %249 = vmatprep.subr.bf16.mxu0 0
    %250 = vmatpush1.bf16.msra.mxu0 %v234
    %251 = vmatprep.subr.bf16.mxu0 0
    %252 = vmatpush1.bf16.msra.mxu0 %v233
    %253 = vmatprep.subr.bf16.mxu0 0
    %254 = vmatpush1.bf16.msra.mxu0 %v232
    %255 = vmatprep.subr.bf16.mxu0 0
    %256 = vmatpush1.bf16.msra.mxu0 %v231
    %257 = vmatprep.subr.bf16.mxu0 0
    %258 = vmatpush1.bf16.msra.mxu0 %v230
    %259 = vmatprep.subr.bf16.mxu0 0
    %260 = vmatpush1.bf16.msra.mxu0 %v229
    %261 = vmatprep.subr.bf16.mxu0 0
    %262 = vmatpush2.bf16.msra.mxu0 0
    %263 = vmatprep.subr.bf16.mxu0 0
    %264 = vmatpush2.bf16.msra.mxu0 0
    %265 = vmatprep.subr.bf16.mxu0 0
    %266 = vmatpush2.bf16.msra.mxu0 0
    %267 = vmatprep.subr.bf16.mxu0 0
    %268 = vmatpush2.bf16.msra.mxu0 0
    %269 = vmatprep.subr.bf16.mxu0 0
    %270 = vmatpush2.bf16.msra.mxu0 0
    %271 = vmatprep.subr.bf16.mxu0 0
    %272 = vmatpush2.bf16.msra.mxu0 0
    %273 = vmatprep.subr.bf16.mxu0 0
    %274 = vmatpush2.bf16.msra.mxu0 0
    %275 = vmatprep.subr.bf16.mxu0 0
    %276 = vmatpush2.bf16.msra.mxu0 0
    %277 = vmatprep.mubr.bf16.mxu0 0
    %278 = vmatmul.mubr.bf16.gmra.mxu0 %v173
    %v279 = vpop.f32.mrf.mxu0
    %v280 = vadd.f32 %v195, %v279
    %v281 = vpop.f32.mrf.mxu0
    %v282 = vpop.f32.mrf.mxu0
    %v283 = vadd.f32 %v195, %v282
    %v284 = vpop.f32.mrf.mxu0
    %285 = vdwg.mxu0
    %286 = vst [vmem:[#allocation8] sm:$0xff] %v280
    %287 = vst [vmem:[#allocation8 + $0x8] sm:$0xff] %v283
    // Predicated region
    $region30: #{tpu_custom_call.1} parent=1 // pred_check
      _
    $region31: #{tpu_custom_call.1} parent=1 // pred_check_branch
      %289 = sbr.rel (0) target = $region33
    $region32: #{tpu_custom_call.1} parent=1 // pred_region
      %s291 = ssub.s32 256, 256
      %292 = vsyncadd [#allocation4], %s291
      %s293 = sshll.u32 [#allocation8], 4
      %s294 = int_to_ptr.vmem [resolvable:$true] %s293
      %299 = dma.vmem_to_hbm [thread:$0]  %s294, 256, %s4, [#allocation4], 128, 128, 8
    $region33: #{tpu_custom_call.1} parent=1 // pred_fallthru
      _
    // Predicated region
    $region34: #{tpu_custom_call.1} parent=1 // pred_check
      _
    $region35: #{tpu_custom_call.1} parent=1 // pred_check_branch
      %301 = sbr.rel (0) target = $region37
    $region36: #{tpu_custom_call.1} parent=1 // pred_region
      %302 = dma.done [#allocation4], 256
    $region37: #{tpu_custom_call.1} parent=1 // pred_fallthru
      _
    %303 = vsyncpa [#allocation3], 1
    %304 = vsyncpa [#allocation6], 1
    %305 = vsyncpa [#allocation4], 1

</llo_original>
